<compile_context>
chip_gen: v7x
topology: tpu7x:2x2x1
jax: 0.10.0
libtpu: 0.0.40
codegen_flags: <defaults>
</compile_context>

<pallas_src>
import jax
import jax.numpy as jnp
from jax import lax
from jax.experimental import pallas as pl
from jax.experimental.pallas import tpu as pltpu


def _discriminator_kernel(x_ref, w1_ref, b1_ref, w2_ref, b2_ref, w3_ref, b3_ref,
                          prob_ref, feat_ref):
    # One batch tile (TB rows) per grid step; the whole MLP is fused here.
    x = x_ref[...].astype(jnp.float32)            # (TB, 2)
    w1 = w1_ref[...]                              # (2, 128) f32

    # fc1: K=2 contraction -> VPU outer product (a K=2 matmul barely wets the
    # MXU systolic array and pays full push/pop latency).
    h1 = x[:, 0:1] * w1[0:1, :] + x[:, 1:2] * w1[1:2, :] + b1_ref[...]
    h1 = jnp.tanh(h1)                             # (TB, 128) f32

    # fc2: the only real MXU matmul.  The wrapper passes w2 in bf16 by default,
    # so both MXU operands are bf16 (native on v5e/v6e/v7x); accumulation is
    # f32 via preferred_element_type.
    w2 = w2_ref[...]
    h2 = jnp.dot(h1.astype(w2.dtype), w2,
                 preferred_element_type=jnp.float32) + b2_ref[...]
    h2 = jnp.tanh(h2)                             # (TB, 128) f32  == x5

    feat_ref[...] = h2.astype(feat_ref.dtype)     # dominant HBM write

    # fc3 (N=1): lane-dense logits.  dot_general contracts over h2's last dim
    # directly -- no explicit h2.T, so no XLU transpose / VMEM temp.
    # w3_ref is the fc3 weight as a sublane-padded (8, 128) row block; row 0 is
    # the real weight, rows 1..7 are zero and discarded by the wrapper.
    logits8 = lax.dot_general(
        w3_ref[...], h2,
        dimension_numbers=(((1,), (1,)), ((), ())),
        preferred_element_type=jnp.float32)       # (8, TB)
    b3 = b3_ref[0, 0]                             # scalar read from SMEM
    # Lane-dense (8, TB) store; only row 0 is consumed.
    prob_ref[...] = jax.nn.sigmoid(logits8 + b3)


def _round_up(n, m):
    return ((n + m - 1) // m) * m


def discriminator_forward(x, params, *, tile_b=8192,
                          feat_dtype=jnp.bfloat16, bf16_matmul=True):
    """x: (B, 2) any float dtype. Returns (sigmoid probs (B,1), features (B,128))."""
    w1, b1, w2, b2, w3, b3 = params
    B = x.shape[0]

    # Lane-dense batch tile (multiple of 128).  Large default amortizes the
    # ~0.35us per-grid-step overhead; when the padded batch exceeds one 128-row
    # tile we guarantee >=2 grid steps so both v7x TensorCores are used.
    bp128 = _round_up(B, 128)
    tb = min(_round_up(tile_b, 128), bp128)
    if bp128 > 128:
        tb = min(tb, _round_up(-(-bp128 // 2), 128))
    bp = _round_up(B, tb)
    num_tiles = bp // tb

    xp = x if bp == B else jnp.pad(x, ((0, bp - B), (0, 0)))

    # fc3 weight as a lane-dense row, padded to a full (8, 128) sublane tile so
    # the MXU sees a well-shaped lhs (rows 1..7 are zero and discarded).
    w3_pad = jnp.pad(jnp.transpose(w3), ((0, 7), (0, 0)))    # (8, 128)

    # bf16 MXU operand for fc2 (accumulation stays f32 inside the kernel).
    w2_in = w2.astype(jnp.bfloat16) if bf16_matmul else w2

    full = lambda i: (0, 0)  # weights/biases: same resident VMEM block every step

    prob8, feat = pl.pallas_call(
        _discriminator_kernel,
        out_shape=(
            jax.ShapeDtypeStruct((8, bp), jnp.float32),      # row 0 = sigmoid(fc3)
            jax.ShapeDtypeStruct((bp, 128), feat_dtype),     # x5 features
        ),
        grid_spec=pltpu.PrefetchScalarGridSpec(
            num_scalar_prefetch=0,
            grid=(num_tiles,),
            in_specs=[
                pl.BlockSpec((tb, 2), lambda i: (i, 0)),     # x tile
                pl.BlockSpec((2, 128), full),                # w1
                pl.BlockSpec((1, 128), full),                # b1
                pl.BlockSpec((128, 128), full),              # w2 (bf16 by default)
                pl.BlockSpec((1, 128), full),                # b2
                pl.BlockSpec((8, 128), full),                # w3 (padded row)
                pl.BlockSpec(memory_space=pltpu.MemorySpace.SMEM),  # b3 scalar
            ],
            out_specs=[
                pl.BlockSpec((8, tb), lambda i: (0, i)),     # probs, lane-dense
                pl.BlockSpec((tb, 128), lambda i: (i, 0)),   # features
            ],
        ),
        compiler_params=pltpu.CompilerParams(
            dimension_semantics=("parallel",),               # megacore on v7x
            vmem_limit_bytes=48 * 1024 * 1024,               # explicit budget (< v7x 64 MiB)
        ),
    )(xp, w1, b1, w2_in, b2, w3_pad, b3)

    probs = prob8[0, :B].reshape(B, 1)
    feats = feat[:B]
    return probs, feats


def init_params(key):
    """Deterministic init mimicking nn.Linear default U(-1/sqrt(fan_in), +1/sqrt(fan_in))."""
    def linear(k, fan_in, fan_out):
        kw, kb = jax.random.split(k)
        bound = 1.0 / jnp.sqrt(fan_in)
        w = jax.random.uniform(kw, (fan_in, fan_out), jnp.float32, -bound, bound)
        b = jax.random.uniform(kb, (1, fan_out), jnp.float32, -bound, bound)
        return w, b

    k1, k2, k3 = jax.random.split(key, 3)
    w1, b1 = linear(k1, 2, 128)
    w2, b2 = linear(k2, 128, 128)
    w3, b3 = linear(k3, 128, 1)
    return (w1, b1, w2, b2, w3, b3)


def _reference_forward(x, params):
    """Pure-JAX reference for a correctness sanity check."""
    w1, b1, w2, b2, w3, b3 = params
    x = x.astype(jnp.float32)
    h1 = jnp.tanh(x @ w1 + b1)
    h2 = jnp.tanh(h1 @ w2 + b2)
    return jax.nn.sigmoid(h2 @ w3 + b3), h2


if __name__ == "__main__":
    key = jax.random.PRNGKey(0)
    k_params, k_x = jax.random.split(key)

    params = init_params(k_params)
    x = jax.random.normal(k_x, (8, 2), jnp.float32)   # batch=8, input dim=2

    ref_probs, ref_feats = _reference_forward(x, params)

    # Strict-parity path: f32 MXU operands, f32 feature store.
    probs_f32, feats_f32 = discriminator_forward(
        x, params, feat_dtype=jnp.float32, bf16_matmul=False)
    jax.block_until_ready((probs_f32, feats_f32))
    assert probs_f32.shape == (8, 1) and feats_f32.shape == (8, 128)
    assert jnp.allclose(probs_f32, ref_probs, atol=1e-5, rtol=1e-5)
    assert jnp.allclose(feats_f32, ref_feats, atol=1e-5, rtol=1e-5)

    # Production default: bf16 fc2 MXU operands + bf16 feature writeback.
    # Looser tolerance because fc2 runs with bf16 operands and the features are
    # rounded to bf16 on store.
    probs, feats = discriminator_forward(x, params)
    jax.block_until_ready((probs, feats))
    assert probs.shape == (8, 1) and feats.shape == (8, 128)
    assert jnp.allclose(probs, ref_probs, atol=1e-2, rtol=1e-2)
    assert jnp.allclose(feats.astype(jnp.float32), ref_feats, atol=5e-2, rtol=5e-2)

    print("KERNEL_OK")
</pallas_src>

<mosaic_0001>
module attributes {stable_mosaic.version = 11 : i64} {
  func.func @_discriminator_kernel(%arg0: i32, %arg1: memref<128x2xf32, #tpu.memory_space<vmem>>, %arg2: memref<2x128xf32, #tpu.memory_space<vmem>>, %arg3: memref<1x128xf32, #tpu.memory_space<vmem>>, %arg4: memref<128x128xf32, #tpu.memory_space<vmem>>, %arg5: memref<1x128xf32, #tpu.memory_space<vmem>>, %arg6: memref<8x128xf32, #tpu.memory_space<vmem>>, %arg7: memref<1x1xf32, #tpu.memory_space<smem>>, %arg8: memref<8x128xf32, #tpu.memory_space<vmem>>, %arg9: memref<128x128xf32, #tpu.memory_space<vmem>>) attributes {dimension_semantics = [#tpu.dimension_semantics<parallel>], iteration_bounds = array<i64: 1>, scalar_prefetch = 0 : i64, scratch_operands = 0 : i64, tpu.core_type = #tpu.core_type<tc>, window_params = [{transform_indices = @transform_0, window_bounds = array<i64: 128, 2>}, {pipeline_mode = #tpu.pipeline_mode<synchronous>, transform_indices = @transform_1, window_bounds = array<i64: 2, 128>}, {pipeline_mode = #tpu.pipeline_mode<synchronous>, transform_indices = @transform_2, window_bounds = array<i64: 1, 128>}, {pipeline_mode = #tpu.pipeline_mode<synchronous>, transform_indices = @transform_3, window_bounds = array<i64: 128, 128>}, {pipeline_mode = #tpu.pipeline_mode<synchronous>, transform_indices = @transform_4, window_bounds = array<i64: 1, 128>}, {pipeline_mode = #tpu.pipeline_mode<synchronous>, transform_indices = @transform_5, window_bounds = array<i64: 8, 128>}, {transform_indices = @transform_6, window_bounds = array<i64: 1, 1>}, {transform_indices = @transform_7, window_bounds = array<i64: 8, 128>}, {transform_indices = @transform_8, window_bounds = array<i64: 128, 128>}]} {
    %c0 = arith.constant 0 : index
    %c0_0 = arith.constant 0 : index
    %0 = vector.load %arg1[%c0, %c0_0] : memref<128x2xf32, #tpu.memory_space<vmem>>, vector<128x2xf32>
    %c0_1 = arith.constant 0 : index
    %c0_2 = arith.constant 0 : index
    %1 = vector.load %arg2[%c0_1, %c0_2] : memref<2x128xf32, #tpu.memory_space<vmem>>, vector<2x128xf32>
    %2 = vector.extract_strided_slice %0 {offsets = [0, 0], sizes = [128, 1], strides = [1, 1]} : vector<128x2xf32> to vector<128x1xf32>
    %3 = vector.extract_strided_slice %1 {offsets = [0, 0], sizes = [1, 128], strides = [1, 1]} : vector<2x128xf32> to vector<1x128xf32>
    %4 = vector.broadcast %2 : vector<128x1xf32> to vector<128x128xf32>
    %5 = vector.broadcast %3 : vector<1x128xf32> to vector<128x128xf32>
    %6 = arith.mulf %4, %5 : vector<128x128xf32>
    %7 = vector.extract_strided_slice %0 {offsets = [0, 1], sizes = [128, 1], strides = [1, 1]} : vector<128x2xf32> to vector<128x1xf32>
    %8 = vector.extract_strided_slice %1 {offsets = [1, 0], sizes = [1, 128], strides = [1, 1]} : vector<2x128xf32> to vector<1x128xf32>
    %9 = vector.broadcast %7 : vector<128x1xf32> to vector<128x128xf32>
    %10 = vector.broadcast %8 : vector<1x128xf32> to vector<128x128xf32>
    %11 = arith.mulf %9, %10 : vector<128x128xf32>
    %12 = arith.addf %6, %11 : vector<128x128xf32>
    %c0_3 = arith.constant 0 : index
    %c0_4 = arith.constant 0 : index
    %13 = vector.load %arg3[%c0_3, %c0_4] : memref<1x128xf32, #tpu.memory_space<vmem>>, vector<1x128xf32>
    %14 = vector.broadcast %13 : vector<1x128xf32> to vector<128x128xf32>
    %15 = arith.addf %12, %14 : vector<128x128xf32>
    %16 = math.tanh %15 : vector<128x128xf32>
    %c0_5 = arith.constant 0 : index
    %c0_6 = arith.constant 0 : index
    %17 = vector.load %arg4[%c0_5, %c0_6] : memref<128x128xf32, #tpu.memory_space<vmem>>, vector<128x128xf32>
    %cst = arith.constant dense<0.000000e+00> : vector<128x128xf32>
    %18 = tpu.matmul %16, %17, %cst {dimension_numbers = #tpu.dot_dimension_numbers<[1], [0], [0], [1], [0, 0, 1, 1], [], []>} : vector<128x128xf32>, vector<128x128xf32>, vector<128x128xf32> -> vector<128x128xf32>
    %c0_7 = arith.constant 0 : index
    %c0_8 = arith.constant 0 : index
    %19 = vector.load %arg5[%c0_7, %c0_8] : memref<1x128xf32, #tpu.memory_space<vmem>>, vector<1x128xf32>
    %20 = vector.broadcast %19 : vector<1x128xf32> to vector<128x128xf32>
    %21 = arith.addf %18, %20 : vector<128x128xf32>
    %22 = math.tanh %21 : vector<128x128xf32>
    %c0_9 = arith.constant 0 : index
    %c0_10 = arith.constant 0 : index
    %23 = vector.load %arg9[%c0_9, %c0_10] : memref<128x128xf32, #tpu.memory_space<vmem>>, vector<128x128xf32>
    tpu.vector_store %arg9[%c0_9, %c0_10], %22 {strides = array<i32>} : memref<128x128xf32, #tpu.memory_space<vmem>>, vector<128x128xf32>,
    %c0_11 = arith.constant 0 : index
    %c0_12 = arith.constant 0 : index
    %24 = vector.load %arg6[%c0_11, %c0_12] : memref<8x128xf32, #tpu.memory_space<vmem>>, vector<8x128xf32>
    %cst_13 = arith.constant dense<0.000000e+00> : vector<8x128xf32>
    %25 = tpu.matmul %24, %22, %cst_13 {dimension_numbers = #tpu.dot_dimension_numbers<[1], [1], [0], [0], [0, 0, 1, 0], [], []>} : vector<8x128xf32>, vector<128x128xf32>, vector<8x128xf32> -> vector<8x128xf32>
    %c0_14 = arith.constant 0 : index
    %c0_15 = arith.constant 0 : index
    %26 = memref.load %arg7[%c0_14, %c0_15] : memref<1x1xf32, #tpu.memory_space<smem>>
    %27 = vector.broadcast %26 : f32 to vector<8x128xf32>
    %28 = arith.addf %25, %27 : vector<8x128xf32>
    %29 = arith.negf %28 : vector<8x128xf32>
    %30 = math.exp %29 : vector<8x128xf32>
    %cst_16 = arith.constant 1.000000e+00 : f32
    %31 = vector.broadcast %cst_16 : f32 to vector<8x128xf32>
    %32 = arith.addf %31, %30 : vector<8x128xf32>
    %33 = arith.divf %31, %32 : vector<8x128xf32>
    %c0_17 = arith.constant 0 : index
    %c0_18 = arith.constant 0 : index
    %34 = vector.load %arg8[%c0_17, %c0_18] : memref<8x128xf32, #tpu.memory_space<vmem>>, vector<8x128xf32>
    tpu.vector_store %arg8[%c0_17, %c0_18], %33 {strides = array<i32>} : memref<8x128xf32, #tpu.memory_space<vmem>>, vector<8x128xf32>,
    return
  }
  func.func @transform_0(%arg0: i32) -> (i32, i32) {
    %c0_i32 = arith.constant 0 : i32
    %c0_i32_0 = arith.constant 0 : i32
    return %arg0, %c0_i32 : i32, i32
  }
  func.func @transform_1(%arg0: i32) -> (i32, i32) {
    %c0_i32 = arith.constant 0 : i32
    %c0_i32_0 = arith.constant 0 : i32
    %c0_i32_1 = arith.constant 0 : i32
    return %c0_i32, %c0_i32_0 : i32, i32
  }
  func.func @transform_2(%arg0: i32) -> (i32, i32) {
    %c0_i32 = arith.constant 0 : i32
    %c0_i32_0 = arith.constant 0 : i32
    %c0_i32_1 = arith.constant 0 : i32
    return %c0_i32, %c0_i32_0 : i32, i32
  }
  func.func @transform_3(%arg0: i32) -> (i32, i32) {
    %c0_i32 = arith.constant 0 : i32
    %c0_i32_0 = arith.constant 0 : i32
    %c0_i32_1 = arith.constant 0 : i32
    return %c0_i32, %c0_i32_0 : i32, i32
  }
  func.func @transform_4(%arg0: i32) -> (i32, i32) {
    %c0_i32 = arith.constant 0 : i32
    %c0_i32_0 = arith.constant 0 : i32
    %c0_i32_1 = arith.constant 0 : i32
    return %c0_i32, %c0_i32_0 : i32, i32
  }
  func.func @transform_5(%arg0: i32) -> (i32, i32) {
    %c0_i32 = arith.constant 0 : i32
    %c0_i32_0 = arith.constant 0 : i32
    %c0_i32_1 = arith.constant 0 : i32
    return %c0_i32, %c0_i32_0 : i32, i32
  }
  func.func @transform_6(%arg0: i32) -> (i32, i32) {
    %c0_i32 = arith.constant 0 : i32
    %c0_i32_0 = arith.constant 0 : i32
    %c0_i32_1 = arith.constant 0 : i32
    return %c0_i32, %c0_i32_0 : i32, i32
  }
  func.func @transform_7(%arg0: i32) -> (i32, i32) {
    %c0_i32 = arith.constant 0 : i32
    %c0_i32_0 = arith.constant 0 : i32
    return %c0_i32, %arg0 : i32, i32
  }
  func.func @transform_8(%arg0: i32) -> (i32, i32) {
    %c0_i32 = arith.constant 0 : i32
    %c0_i32_0 = arith.constant 0 : i32
    return %arg0, %c0_i32 : i32, i32
  }
}

</mosaic_0001>

<llo_original>
// kernel: tpu_custom_call.1
$region0: #{tpu_custom_call.1}
  #allocation0 [shape = 'u32[]', space=smem, size = 0x4, offset = 0x4, fixed_abs, tag = 'smem constant byte address 0x4 - core index']
  #allocation1 [shape = 'u32[144,128]{1,0:T(1,128)}', space=vmem, size = 0x12000, scoped, tag = 'internal scratch']
  #allocation2 [shape = 'f32[1,1]{1,0:T(1,128)S(6)}', space=smem, size = 0x200, scoped, tag = 'scoped memory for tpu_custom_call.1']
  %s0 = inlined_call_operand.vmem [shape: f32[128,2], index: 0, kind: input, shape index: {}]
  %s1 = inlined_call_operand.vmem [shape: f32[2,128], index: 1, kind: input, shape index: {}]
  %s2 = inlined_call_operand.vmem [shape: f32[1,128], index: 2, kind: input, shape index: {}]
  %s3 = inlined_call_operand.vmem [shape: f32[128,128], index: 3, kind: input, shape index: {}]
  %s4 = inlined_call_operand.vmem [shape: f32[1,128], index: 4, kind: input, shape index: {}]
  %s5 = inlined_call_operand.vmem [shape: f32[8,128], index: 5, kind: input, shape index: {}]
  %s6 = inlined_call_operand.<no memory space> [shape: f32[1,1], index: 6, kind: input, shape index: {}]
  %s7 = inlined_call_operand.hbm [shape: f32[8,128], index: 7, kind: output, shape index: {0}]
  %s8 = inlined_call_operand.hbm [shape: f32[128,128], index: 8, kind: output, shape index: {1}]
  %9 = xla_tuple %s7, %s8
  %s10 = sld [smem:[#allocation0]]
  $region46: #{tpu_custom_call.1} parent=0
    _
  %s12 = ssub.s32 1, %s10
  %s13 = scalar_select 0, %s12, %s10
  %14 = sst [smem:[#allocation2]] %s6
  $region1: #{tpu_custom_call.1} parent=0
    #allocation3 [shape = 'u8[4096]{0}', space=vmem, size = 0x1000, scoped, tag = 'output window, operand 0, single buffered']
    #allocation4 [shape = 's32[1]{0}', space=sflag, size = 0x4, scoped, tag = 'scoped memory for tpu_custom_call.1']
    #allocation5 [shape = 'u8[65536]{0}', space=vmem, size = 0x10000, scoped, tag = 'output window, operand 1, single buffered']
    #allocation6 [shape = 's32[1]{0}', space=sflag, size = 0x4, scoped, tag = 'scoped memory for tpu_custom_call.1']
    %15 = vsyncpa [#allocation4], 0
    %16 = vsyncpa [#allocation6], 0
    // Predicated region
    $region2: #{tpu_custom_call.1} parent=1 // pred_check
      _
    $region3: #{tpu_custom_call.1} parent=1 // pred_check_branch
      %18 = sbr.rel (0) target = $region5
    $region4: #{tpu_custom_call.1} parent=1 // pred_region
      _
    $region5: #{tpu_custom_call.1} parent=1 // pred_fallthru
      _
    // Predicated region
    $region6: #{tpu_custom_call.1} parent=1 // pred_check
      _
    $region7: #{tpu_custom_call.1} parent=1 // pred_check_branch
      %20 = sbr.rel (0) target = $region9
    $region8: #{tpu_custom_call.1} parent=1 // pred_region
      _
    $region9: #{tpu_custom_call.1} parent=1 // pred_fallthru
      _
    // Predicated region
    $region10: #{tpu_custom_call.1} parent=1 // pred_check
      _
    $region11: #{tpu_custom_call.1} parent=1 // pred_check_branch
      %22 = sbr.rel (0) target = $region13
    $region12: #{tpu_custom_call.1} parent=1 // pred_region
      _
    $region13: #{tpu_custom_call.1} parent=1 // pred_fallthru
      _
    // Predicated region
    $region14: #{tpu_custom_call.1} parent=1 // pred_check
      _
    $region15: #{tpu_custom_call.1} parent=1 // pred_check_branch
      %24 = sbr.rel (0) target = $region17
    $region16: #{tpu_custom_call.1} parent=1 // pred_region
      _
    $region17: #{tpu_custom_call.1} parent=1 // pred_fallthru
      _
    // Predicated region
    $region18: #{tpu_custom_call.1} parent=1 // pred_check
      _
    $region19: #{tpu_custom_call.1} parent=1 // pred_check_branch
      %26 = sbr.rel (0) target = $region21
    $region20: #{tpu_custom_call.1} parent=1 // pred_region
      _
    $region21: #{tpu_custom_call.1} parent=1 // pred_fallthru
      _
    // Predicated region
    $region22: #{tpu_custom_call.1} parent=1 // pred_check
      _
    $region23: #{tpu_custom_call.1} parent=1 // pred_check_branch
      %28 = sbr.rel (0) target = $region25
    $region24: #{tpu_custom_call.1} parent=1 // pred_region
      _
    $region25: #{tpu_custom_call.1} parent=1 // pred_fallthru
      _
    // Predicated region
    $region26: #{tpu_custom_call.1} parent=1 // pred_check
      _
    $region27: #{tpu_custom_call.1} parent=1 // pred_check_branch
      %30 = sbr.rel (0) target = $region29
    $region28: #{tpu_custom_call.1} parent=1 // pred_region
      _
    $region29: #{tpu_custom_call.1} parent=1 // pred_fallthru
      _
    %v31 = vld [vmem:[%s0] sm:$0xff]
    %v32 = vld [vmem:[%s0 + $0x8] sm:$0xff]
    %v33 = vld [vmem:[%s0 + $0x10] sm:$0xff]
    %v34 = vld [vmem:[%s0 + $0x18] sm:$0xff]
    %v35 = vld [vmem:[%s0 + $0x20] sm:$0xff]
    %v36 = vld [vmem:[%s0 + $0x28] sm:$0xff]
    %v37 = vld [vmem:[%s0 + $0x30] sm:$0xff]
    %v38 = vld [vmem:[%s0 + $0x38] sm:$0xff]
    %v39 = vld [vmem:[%s0 + $0x40] sm:$0xff]
    %v40 = vld [vmem:[%s0 + $0x48] sm:$0xff]
    %v41 = vld [vmem:[%s0 + $0x50] sm:$0xff]
    %v42 = vld [vmem:[%s0 + $0x58] sm:$0xff]
    %v43 = vld [vmem:[%s0 + $0x60] sm:$0xff]
    %v44 = vld [vmem:[%s0 + $0x68] sm:$0xff]
    %v45 = vld [vmem:[%s0 + $0x70] sm:$0xff]
    %v46 = vld [vmem:[%s0 + $0x78] sm:$0xff]
    %v47 = vld [vmem:[%s1] sm:$0x3]
    %49 = vset.pattern.permute.xlu0 0
    %50 = vperm.xlu0 %49, %v31
    %v51 = vpop.permute.xlu0 %50
    %54 = vset.pattern.permute.xlu0 0
    %55 = vperm.xlu0 %54, %v32
    %v56 = vpop.permute.xlu0 %55
    %59 = vset.pattern.permute.xlu0 0
    %60 = vperm.xlu0 %59, %v33
    %v61 = vpop.permute.xlu0 %60
    %64 = vset.pattern.permute.xlu0 0
    %65 = vperm.xlu0 %64, %v34
    %v66 = vpop.permute.xlu0 %65
    %69 = vset.pattern.permute.xlu0 0
    %70 = vperm.xlu0 %69, %v35
    %v71 = vpop.permute.xlu0 %70
    %74 = vset.pattern.permute.xlu0 0
    %75 = vperm.xlu0 %74, %v36
    %v76 = vpop.permute.xlu0 %75
    %79 = vset.pattern.permute.xlu0 0
    %80 = vperm.xlu0 %79, %v37
    %v81 = vpop.permute.xlu0 %80
    %84 = vset.pattern.permute.xlu0 0
    %85 = vperm.xlu0 %84, %v38
    %v86 = vpop.permute.xlu0 %85
    %89 = vset.pattern.permute.xlu0 0
    %90 = vperm.xlu0 %89, %v39
    %v91 = vpop.permute.xlu0 %90
    %94 = vset.pattern.permute.xlu0 0
    %95 = vperm.xlu0 %94, %v40
    %v96 = vpop.permute.xlu0 %95
    %99 = vset.pattern.permute.xlu0 0
    %100 = vperm.xlu0 %99, %v41
    %v101 = vpop.permute.xlu0 %100
    %104 = vset.pattern.permute.xlu0 0
    %105 = vperm.xlu0 %104, %v42
    %v106 = vpop.permute.xlu0 %105
    %109 = vset.pattern.permute.xlu0 0
    %110 = vperm.xlu0 %109, %v43
    %v111 = vpop.permute.xlu0 %110
    %114 = vset.pattern.permute.xlu0 0
    %115 = vperm.xlu0 %114, %v44
    %v116 = vpop.permute.xlu0 %115
    %119 = vset.pattern.permute.xlu0 0
    %120 = vperm.xlu0 %119, %v45
    %v121 = vpop.permute.xlu0 %120
    %124 = vset.pattern.permute.xlu0 0
    %125 = vperm.xlu0 %124, %v46
    %v126 = vpop.permute.xlu0 %125
    %v128 = vlaneseq
    %v129 = vshrl.u32 %v128, 7
    %v130 = vsub.s32 0, %v129
    %v131 = vrot.slane %v47, %v130
    %v132 = vmul.f32 %v51, %v131
    %v133 = vmul.f32 %v56, %v131
    %v134 = vmul.f32 %v61, %v131
    %v135 = vmul.f32 %v66, %v131
    %v136 = vmul.f32 %v71, %v131
    %v137 = vmul.f32 %v76, %v131
    %v138 = vmul.f32 %v81, %v131
    %v139 = vmul.f32 %v86, %v131
    %v140 = vmul.f32 %v91, %v131
    %v141 = vmul.f32 %v96, %v131
    %v142 = vmul.f32 %v101, %v131
    %v143 = vmul.f32 %v106, %v131
    %v144 = vmul.f32 %v111, %v131
    %v145 = vmul.f32 %v116, %v131
    %v146 = vmul.f32 %v121, %v131
    %v147 = vmul.f32 %v126, %v131
    %148 = vset.pattern.permute.xlu0 1
    %149 = vperm.xlu0 %148, %v31
    %v150 = vpop.permute.xlu0 %149
    %152 = vset.pattern.permute.xlu0 1
    %153 = vperm.xlu0 %152, %v32
    %v154 = vpop.permute.xlu0 %153
    %156 = vset.pattern.permute.xlu0 1
    %157 = vperm.xlu0 %156, %v33
    %v158 = vpop.permute.xlu0 %157
    %160 = vset.pattern.permute.xlu0 1
    %161 = vperm.xlu0 %160, %v34
    %v162 = vpop.permute.xlu0 %161
    %164 = vset.pattern.permute.xlu0 1
    %165 = vperm.xlu0 %164, %v35
    %v166 = vpop.permute.xlu0 %165
    %168 = vset.pattern.permute.xlu0 1
    %169 = vperm.xlu0 %168, %v36
    %v170 = vpop.permute.xlu0 %169
    %172 = vset.pattern.permute.xlu0 1
    %173 = vperm.xlu0 %172, %v37
    %v174 = vpop.permute.xlu0 %173
    %176 = vset.pattern.permute.xlu0 1
    %177 = vperm.xlu0 %176, %v38
    %v178 = vpop.permute.xlu0 %177
    %180 = vset.pattern.permute.xlu0 1
    %181 = vperm.xlu0 %180, %v39
    %v182 = vpop.permute.xlu0 %181
    %184 = vset.pattern.permute.xlu0 1
    %185 = vperm.xlu0 %184, %v40
    %v186 = vpop.permute.xlu0 %185
    %188 = vset.pattern.permute.xlu0 1
    %189 = vperm.xlu0 %188, %v41
    %v190 = vpop.permute.xlu0 %189
    %192 = vset.pattern.permute.xlu0 1
    %193 = vperm.xlu0 %192, %v42
    %v194 = vpop.permute.xlu0 %193
    %196 = vset.pattern.permute.xlu0 1
    %197 = vperm.xlu0 %196, %v43
    %v198 = vpop.permute.xlu0 %197
    %200 = vset.pattern.permute.xlu0 1
    %201 = vperm.xlu0 %200, %v44
    %v202 = vpop.permute.xlu0 %201
    %204 = vset.pattern.permute.xlu0 1
    %205 = vperm.xlu0 %204, %v45
    %v206 = vpop.permute.xlu0 %205
    %208 = vset.pattern.permute.xlu0 1
    %209 = vperm.xlu0 %208, %v46
    %v210 = vpop.permute.xlu0 %209
    %v212 = vlaneseq
    %v213 = vshrl.u32 %v212, 7
    %v214 = vsub.s32 1, %v213
    %v215 = vrot.slane %v47, %v214
    %v216 = vmul.f32 %v150, %v215
    %v217 = vmul.f32 %v154, %v215
    %v218 = vmul.f32 %v158, %v215
    %v219 = vmul.f32 %v162, %v215
    %v220 = vmul.f32 %v166, %v215
    %v221 = vmul.f32 %v170, %v215
    %v222 = vmul.f32 %v174, %v215
    %v223 = vmul.f32 %v178, %v215
    %v224 = vmul.f32 %v182, %v215
    %v225 = vmul.f32 %v186, %v215
    %v226 = vmul.f32 %v190, %v215
    %v227 = vmul.f32 %v194, %v215
    %v228 = vmul.f32 %v198, %v215
    %v229 = vmul.f32 %v202, %v215
    %v230 = vmul.f32 %v206, %v215
    %v231 = vmul.f32 %v210, %v215
    %v232 = vadd.f32 %v132, %v216
    %v233 = vadd.f32 %v133, %v217
    %v234 = vadd.f32 %v134, %v218
    %v235 = vadd.f32 %v135, %v219
    %v236 = vadd.f32 %v136, %v220
    %v237 = vadd.f32 %v137, %v221
    %v238 = vadd.f32 %v138, %v222
    %v239 = vadd.f32 %v139, %v223
    %v240 = vadd.f32 %v140, %v224
    %v241 = vadd.f32 %v141, %v225
    %v242 = vadd.f32 %v142, %v226
    %v243 = vadd.f32 %v143, %v227
    %v244 = vadd.f32 %v144, %v228
    %v245 = vadd.f32 %v145, %v229
    %v246 = vadd.f32 %v146, %v230
    %v247 = vadd.f32 %v147, %v231
    %v248 = vld [vmem:[%s2] sm:$0x1]
    %v250 = vlaneseq
    %v251 = vshrl.u32 %v250, 7
    %v252 = vsub.s32 0, %v251
    %v253 = vrot.slane %v248, %v252
    %v255 = vadd.f32 %v232, %v253
    %v256 = vadd.f32 %v233, %v253
    %v257 = vadd.f32 %v234, %v253
    %v258 = vadd.f32 %v235, %v253
    %v259 = vadd.f32 %v236, %v253
    %v260 = vadd.f32 %v237, %v253
    %v261 = vadd.f32 %v238, %v253
    %v262 = vadd.f32 %v239, %v253
    %v263 = vadd.f32 %v240, %v253
    %v264 = vadd.f32 %v241, %v253
    %v265 = vadd.f32 %v242, %v253
    %v266 = vadd.f32 %v243, %v253
    %v267 = vadd.f32 %v244, %v253
    %v268 = vadd.f32 %v245, %v253
    %v269 = vadd.f32 %v246, %v253
    %v270 = vadd.f32 %v247, %v253
    %v271 = vtanh.pop %v255
    %v272 = vtanh.pop %v256
    %v273 = vtanh.pop %v257
    %v274 = vtanh.pop %v258
    %v275 = vtanh.pop %v259
    %v276 = vtanh.pop %v260
    %v277 = vtanh.pop %v261
    %v278 = vtanh.pop %v262
    %v279 = vtanh.pop %v263
    %v280 = vtanh.pop %v264
    %v281 = vtanh.pop %v265
    %v282 = vtanh.pop %v266
    %v283 = vtanh.pop %v267
    %v284 = vtanh.pop %v268
    %v285 = vtanh.pop %v269
    %v286 = vtanh.pop %v270
    %v287 = vld [vmem:[%s3] sm:$0xff]
    %v288 = vld [vmem:[%s3 + $0x8] sm:$0xff]
    %v289 = vld [vmem:[%s3 + $0x10] sm:$0xff]
    %v290 = vld [vmem:[%s3 + $0x18] sm:$0xff]
    %v291 = vld [vmem:[%s3 + $0x20] sm:$0xff]
    %v292 = vld [vmem:[%s3 + $0x28] sm:$0xff]
    %v293 = vld [vmem:[%s3 + $0x30] sm:$0xff]
    %v294 = vld [vmem:[%s3 + $0x38] sm:$0xff]
    %v295 = vld [vmem:[%s3 + $0x40] sm:$0xff]
    %v296 = vld [vmem:[%s3 + $0x48] sm:$0xff]
    %v297 = vld [vmem:[%s3 + $0x50] sm:$0xff]
    %v298 = vld [vmem:[%s3 + $0x58] sm:$0xff]
    %v299 = vld [vmem:[%s3 + $0x60] sm:$0xff]
    %v300 = vld [vmem:[%s3 + $0x68] sm:$0xff]
    %v301 = vld [vmem:[%s3 + $0x70] sm:$0xff]
    %v302 = vld [vmem:[%s3 + $0x78] sm:$0xff]
    %v303 = vld [vmem:[%s4] sm:$0x1]
    %v305 = vlaneseq
    %v306 = vshrl.u32 %v305, 7
    %v307 = vsub.s32 0, %v306
    %v308 = vrot.slane %v303, %v307
    %310 = vmatprep.subr.mxu0 0.0
    %311 = vmatpush1.msra.mxu0 %v287
    %312 = vmatprep.subr.mxu0 0.0
    %313 = vmatpush1.msra.mxu0 %v288
    %314 = vmatprep.subr.mxu0 0.0
    %315 = vmatpush1.msra.mxu0 %v289
    %316 = vmatprep.subr.mxu0 0.0
    %317 = vmatpush1.msra.mxu0 %v290
    %318 = vmatprep.subr.mxu0 0.0
    %319 = vmatpush1.msra.mxu0 %v291
    %320 = vmatprep.subr.mxu0 0.0
    %321 = vmatpush1.msra.mxu0 %v292
    %322 = vmatprep.subr.mxu0 0.0
    %323 = vmatpush1.msra.mxu0 %v293
    %324 = vmatprep.subr.mxu0 0.0
    %325 = vmatpush1.msra.mxu0 %v294
    %326 = vmatprep.subr.mxu0 0.0
    %327 = vmatpush1.msra.mxu0 %v295
    %328 = vmatprep.subr.mxu0 0.0
    %329 = vmatpush1.msra.mxu0 %v296
    %330 = vmatprep.subr.mxu0 0.0
    %331 = vmatpush1.msra.mxu0 %v297
    %332 = vmatprep.subr.mxu0 0.0
    %333 = vmatpush1.msra.mxu0 %v298
    %334 = vmatprep.subr.mxu0 0.0
    %335 = vmatpush1.msra.mxu0 %v299
    %336 = vmatprep.subr.mxu0 0.0
    %337 = vmatpush1.msra.mxu0 %v300
    %338 = vmatprep.subr.mxu0 0.0
    %339 = vmatpush1.msra.mxu0 %v301
    %340 = vmatprep.subr.mxu0 0.0
    %341 = vmatpush1.msra.mxu0 %v302
    %342 = vmatprep.subr.mxu0 0.0
    %343 = vmatpush1.msra.mxu0 0.0
    %344 = vmatprep.subr.mxu0 0.0
    %345 = vmatpush1.msra.mxu0 0.0
    %346 = vmatprep.subr.mxu0 0.0
    %347 = vmatpush1.msra.mxu0 0.0
    %348 = vmatprep.subr.mxu0 0.0
    %349 = vmatpush1.msra.mxu0 0.0
    %350 = vmatprep.subr.mxu0 0.0
    %351 = vmatpush1.msra.mxu0 0.0
    %352 = vmatprep.subr.mxu0 0.0
    %353 = vmatpush1.msra.mxu0 0.0
    %354 = vmatprep.subr.mxu0 0.0
    %355 = vmatpush1.msra.mxu0 0.0
    %356 = vmatprep.subr.mxu0 0.0
    %357 = vmatpush1.msra.mxu0 0.0
    %358 = vmatprep.subr.mxu0 0.0
    %359 = vmatpush1.msra.mxu0 0.0
    %360 = vmatprep.subr.mxu0 0.0
    %361 = vmatpush1.msra.mxu0 0.0
    %362 = vmatprep.subr.mxu0 0.0
    %363 = vmatpush1.msra.mxu0 0.0
    %364 = vmatprep.subr.mxu0 0.0
    %365 = vmatpush1.msra.mxu0 0.0
    %366 = vmatprep.subr.mxu0 0.0
    %367 = vmatpush1.msra.mxu0 0.0
    %368 = vmatprep.subr.mxu0 0.0
    %369 = vmatpush1.msra.mxu0 0.0
    %370 = vmatprep.subr.mxu0 0.0
    %371 = vmatpush1.msra.mxu0 0.0
    %372 = vmatprep.subr.mxu0 0.0
    %373 = vmatpush1.msra.mxu0 0.0
    %374 = vmatprep.mubr.f32.mxu0 0.0
    %375 = vmatmul.mubr.f32.gmra.mrb[0].mxu0 %v271
    %v376 = vpop.f32.mrb[0].mxu0
    %v377 = vadd.f32 %v308, %v376
    %v378 = vpop.f32.mrb[0].mxu0
    %379 = vmatprep.mubr.f32.mxu0 0.0
    %380 = vmatmul.mubr.f32.gmra.mrb[0].mxu0 %v272
    %v381 = vpop.f32.mrb[0].mxu0
    %v382 = vadd.f32 %v308, %v381
    %v383 = vpop.f32.mrb[0].mxu0
    %384 = vmatprep.mubr.f32.mxu0 0.0
    %385 = vmatmul.mubr.f32.gmra.mrb[0].mxu0 %v273
    %v386 = vpop.f32.mrb[0].mxu0
    %v387 = vadd.f32 %v308, %v386
    %v388 = vpop.f32.mrb[0].mxu0
    %389 = vmatprep.mubr.f32.mxu0 0.0
    %390 = vmatmul.mubr.f32.gmra.mrb[0].mxu0 %v274
    %v391 = vpop.f32.mrb[0].mxu0
    %v392 = vadd.f32 %v308, %v391
    %v393 = vpop.f32.mrb[0].mxu0
    %394 = vmatprep.mubr.f32.mxu0 0.0
    %395 = vmatmul.mubr.f32.gmra.mrb[0].mxu0 %v275
    %v396 = vpop.f32.mrb[0].mxu0
    %v397 = vadd.f32 %v308, %v396
    %v398 = vpop.f32.mrb[0].mxu0
    %399 = vmatprep.mubr.f32.mxu0 0.0
    %400 = vmatmul.mubr.f32.gmra.mrb[0].mxu0 %v276
    %v401 = vpop.f32.mrb[0].mxu0
    %v402 = vadd.f32 %v308, %v401
    %v403 = vpop.f32.mrb[0].mxu0
    %404 = vmatprep.mubr.f32.mxu0 0.0
    %405 = vmatmul.mubr.f32.gmra.mrb[0].mxu0 %v277
    %v406 = vpop.f32.mrb[0].mxu0
    %v407 = vadd.f32 %v308, %v406
    %v408 = vpop.f32.mrb[0].mxu0
    %409 = vmatprep.mubr.f32.mxu0 0.0
    %410 = vmatmul.mubr.f32.gmra.mrb[0].mxu0 %v278
    %v411 = vpop.f32.mrb[0].mxu0
    %v412 = vadd.f32 %v308, %v411
    %v413 = vpop.f32.mrb[0].mxu0
    %414 = vmatprep.mubr.f32.mxu0 0.0
    %415 = vmatmul.mubr.f32.gmra.mrb[0].mxu0 %v279
    %v416 = vpop.f32.mrb[0].mxu0
    %v417 = vadd.f32 %v308, %v416
    %v418 = vpop.f32.mrb[0].mxu0
    %419 = vmatprep.mubr.f32.mxu0 0.0
    %420 = vmatmul.mubr.f32.gmra.mrb[0].mxu0 %v280
    %v421 = vpop.f32.mrb[0].mxu0
    %v422 = vadd.f32 %v308, %v421
    %v423 = vpop.f32.mrb[0].mxu0
    %424 = vmatprep.mubr.f32.mxu0 0.0
    %425 = vmatmul.mubr.f32.gmra.mrb[0].mxu0 %v281
    %v426 = vpop.f32.mrb[0].mxu0
    %v427 = vadd.f32 %v308, %v426
    %v428 = vpop.f32.mrb[0].mxu0
    %429 = vmatprep.mubr.f32.mxu0 0.0
    %430 = vmatmul.mubr.f32.gmra.mrb[0].mxu0 %v282
    %v431 = vpop.f32.mrb[0].mxu0
    %v432 = vadd.f32 %v308, %v431
    %v433 = vpop.f32.mrb[0].mxu0
    %434 = vmatprep.mubr.f32.mxu0 0.0
    %435 = vmatmul.mubr.f32.gmra.mrb[0].mxu0 %v283
    %v436 = vpop.f32.mrb[0].mxu0
    %v437 = vadd.f32 %v308, %v436
    %v438 = vpop.f32.mrb[0].mxu0
    %439 = vmatprep.mubr.f32.mxu0 0.0
    %440 = vmatmul.mubr.f32.gmra.mrb[0].mxu0 %v284
    %v441 = vpop.f32.mrb[0].mxu0
    %v442 = vadd.f32 %v308, %v441
    %v443 = vpop.f32.mrb[0].mxu0
    %444 = vmatprep.mubr.f32.mxu0 0.0
    %445 = vmatmul.mubr.f32.gmra.mrb[0].mxu0 %v285
    %v446 = vpop.f32.mrb[0].mxu0
    %v447 = vadd.f32 %v308, %v446
    %v448 = vpop.f32.mrb[0].mxu0
    %449 = vmatprep.mubr.f32.mxu0 0.0
    %450 = vmatmul.mubr.f32.gmra.mrb[0].mxu0 %v286
    %v451 = vpop.f32.mrb[0].mxu0
    %v452 = vadd.f32 %v308, %v451
    %v453 = vpop.f32.mrb[0].mxu0
    %454 = vdwg.mxu0
    %v455 = vtanh.pop %v377
    %v456 = vtanh.pop %v382
    %v457 = vtanh.pop %v387
    %v458 = vtanh.pop %v392
    %v459 = vtanh.pop %v397
    %v460 = vtanh.pop %v402
    %v461 = vtanh.pop %v407
    %v462 = vtanh.pop %v412
    %v463 = vtanh.pop %v417
    %v464 = vtanh.pop %v422
    %v465 = vtanh.pop %v427
    %v466 = vtanh.pop %v432
    %v467 = vtanh.pop %v437
    %v468 = vtanh.pop %v442
    %v469 = vtanh.pop %v447
    %v470 = vtanh.pop %v452
    %471 = vst [vmem:[#allocation5] sm:$0xff] %v455
    %472 = vst [vmem:[#allocation5 + $0x8] sm:$0xff] %v456
    %473 = vst [vmem:[#allocation5 + $0x10] sm:$0xff] %v457
    %474 = vst [vmem:[#allocation5 + $0x18] sm:$0xff] %v458
    %475 = vst [vmem:[#allocation5 + $0x20] sm:$0xff] %v459
    %476 = vst [vmem:[#allocation5 + $0x28] sm:$0xff] %v460
    %477 = vst [vmem:[#allocation5 + $0x30] sm:$0xff] %v461
    %478 = vst [vmem:[#allocation5 + $0x38] sm:$0xff] %v462
    %479 = vst [vmem:[#allocation5 + $0x40] sm:$0xff] %v463
    %480 = vst [vmem:[#allocation5 + $0x48] sm:$0xff] %v464
    %481 = vst [vmem:[#allocation5 + $0x50] sm:$0xff] %v465
    %482 = vst [vmem:[#allocation5 + $0x58] sm:$0xff] %v466
    %483 = vst [vmem:[#allocation5 + $0x60] sm:$0xff] %v467
    %484 = vst [vmem:[#allocation5 + $0x68] sm:$0xff] %v468
    %485 = vst [vmem:[#allocation5 + $0x70] sm:$0xff] %v469
    %486 = vst [vmem:[#allocation5 + $0x78] sm:$0xff] %v470
    %v487 = vld [vmem:[%s5] sm:$0xff]
    %s488 = sld [smem:[#allocation2]]
    %v489 = vstv %s488
    %490 = vmatprep.subr.mxu0 0.0
    %491 = vmatpush1.xpose.msra.mxu0 %v455
    %492 = vmatprep.subr.mxu0 0.0
    %493 = vmatpush1.xpose.msra.mxu0 %v456
    %494 = vmatprep.subr.mxu0 0.0
    %495 = vmatpush1.xpose.msra.mxu0 %v457
    %496 = vmatprep.subr.mxu0 0.0
    %497 = vmatpush1.xpose.msra.mxu0 %v458
    %498 = vmatprep.subr.mxu0 0.0
    %499 = vmatpush1.xpose.msra.mxu0 %v459
    %500 = vmatprep.subr.mxu0 0.0
    %501 = vmatpush1.xpose.msra.mxu0 %v460
    %502 = vmatprep.subr.mxu0 0.0
    %503 = vmatpush1.xpose.msra.mxu0 %v461
    %504 = vmatprep.subr.mxu0 0.0
    %505 = vmatpush1.xpose.msra.mxu0 %v462
    %506 = vmatprep.subr.mxu0 0.0
    %507 = vmatpush1.xpose.msra.mxu0 %v463
    %508 = vmatprep.subr.mxu0 0.0
    %509 = vmatpush1.xpose.msra.mxu0 %v464
    %510 = vmatprep.subr.mxu0 0.0
    %511 = vmatpush1.xpose.msra.mxu0 %v465
    %512 = vmatprep.subr.mxu0 0.0
    %513 = vmatpush1.xpose.msra.mxu0 %v466
    %514 = vmatprep.subr.mxu0 0.0
    %515 = vmatpush1.xpose.msra.mxu0 %v467
    %516 = vmatprep.subr.mxu0 0.0
    %517 = vmatpush1.xpose.msra.mxu0 %v468
    %518 = vmatprep.subr.mxu0 0.0
    %519 = vmatpush1.xpose.msra.mxu0 %v469
    %520 = vmatprep.subr.mxu0 0.0
    %521 = vmatpush1.xpose.msra.mxu0 %v470
    %522 = vmatprep.subr.mxu0 0.0
    %523 = vmatpush1.xpose.msra.mxu0 0.0
    %524 = vmatprep.subr.mxu0 0.0
    %525 = vmatpush1.xpose.msra.mxu0 0.0
    %526 = vmatprep.subr.mxu0 0.0
    %527 = vmatpush1.xpose.msra.mxu0 0.0
    %528 = vmatprep.subr.mxu0 0.0
    %529 = vmatpush1.xpose.msra.mxu0 0.0
    %530 = vmatprep.subr.mxu0 0.0
    %531 = vmatpush1.xpose.msra.mxu0 0.0
    %532 = vmatprep.subr.mxu0 0.0
    %533 = vmatpush1.xpose.msra.mxu0 0.0
    %534 = vmatprep.subr.mxu0 0.0
    %535 = vmatpush1.xpose.msra.mxu0 0.0
    %536 = vmatprep.subr.mxu0 0.0
    %537 = vmatpush1.xpose.msra.mxu0 0.0
    %538 = vmatprep.subr.mxu0 0.0
    %539 = vmatpush1.xpose.msra.mxu0 0.0
    %540 = vmatprep.subr.mxu0 0.0
    %541 = vmatpush1.xpose.msra.mxu0 0.0
    %542 = vmatprep.subr.mxu0 0.0
    %543 = vmatpush1.xpose.msra.mxu0 0.0
    %544 = vmatprep.subr.mxu0 0.0
    %545 = vmatpush1.xpose.msra.mxu0 0.0
    %546 = vmatprep.subr.mxu0 0.0
    %547 = vmatpush1.xpose.msra.mxu0 0.0
    %548 = vmatprep.subr.mxu0 0.0
    %549 = vmatpush1.xpose.msra.mxu0 0.0
    %550 = vmatprep.subr.mxu0 0.0
    %551 = vmatpush1.xpose.msra.mxu0 0.0
    %552 = vmatprep.subr.mxu0 0.0
    %553 = vmatpush1.xpose.msra.mxu0 0.0
    %554 = vmatprep.mubr.f32.mxu0 0.0
    %555 = vmatmul.mubr.f32.gmra.mrb[0].mxu0 %v487
    %v556 = vpop.f32.mrb[0].mxu0
    %v557 = vadd.f32 %v489, %v556
    %v558 = vpop.f32.mrb[0].mxu0
    %559 = vdwg.mxu0
    %v560 = vxor.u32 %v557, 2147483648
    %v561 = vmul.f32 %v560, 1.442695
    %v562 = vpow.pop %v561
    %v563 = vadd.f32 %v562, 1.0
    %v564 = vrcp.pop %v563
    %v565 = vmul.f32 1.0, %v564
    %566 = vst [vmem:[#allocation3] sm:$0xff] %v565
    // Predicated region
    $region30: #{tpu_custom_call.1} parent=1 // pred_check
      _
    $region31: #{tpu_custom_call.1} parent=1 // pred_check_branch
      %568 = sbr.rel (0) target = $region33
    $region32: #{tpu_custom_call.1} parent=1 // pred_region
      %s570 = ssub.s32 128, 128
      %571 = vsyncadd [#allocation4], %s570
      %s573 = sshll.u32 [#allocation3], 4
      %s574 = int_to_ptr.vmem [resolvable:$true] %s573
      %576 = dma.vmem_to_hbm [thread:$0]  %s574, 128, %s7, [#allocation4]
    $region33: #{tpu_custom_call.1} parent=1 // pred_fallthru
      _
    // Predicated region
    $region34: #{tpu_custom_call.1} parent=1 // pred_check
      _
    $region35: #{tpu_custom_call.1} parent=1 // pred_check_branch
      %578 = sbr.rel (0) target = $region37
    $region36: #{tpu_custom_call.1} parent=1 // pred_region
      %s580 = ssub.s32 2048, 2048
      %581 = vsyncadd [#allocation6], %s580
      %s582 = sshll.u32 [#allocation5], 4
      %s583 = int_to_ptr.vmem [resolvable:$true] %s582
      %588 = dma.vmem_to_hbm [thread:$0]  %s583, 2048, %s8, [#allocation6], 128, 128, 8
    $region37: #{tpu_custom_call.1} parent=1 // pred_fallthru
      _
    // Predicated region
    $region38: #{tpu_custom_call.1} parent=1 // pred_check
      _
    $region39: #{tpu_custom_call.1} parent=1 // pred_check_branch
      %590 = sbr.rel (0) target = $region41
    $region40: #{tpu_custom_call.1} parent=1 // pred_region
      %591 = dma.done [#allocation4], 128
    $region41: #{tpu_custom_call.1} parent=1 // pred_fallthru
      _
    // Predicated region
    $region42: #{tpu_custom_call.1} parent=1 // pred_check
      _
    $region43: #{tpu_custom_call.1} parent=1 // pred_check_branch
      %593 = sbr.rel (0) target = $region45
    $region44: #{tpu_custom_call.1} parent=1 // pred_region
      %594 = dma.done [#allocation6], 2048
    $region45: #{tpu_custom_call.1} parent=1 // pred_fallthru
      _
    %595 = vsyncpa [#allocation4], 1
    %596 = vsyncpa [#allocation6], 1

</llo_original>
